<compile_context>
chip_gen: v7x
topology: tpu7x:2x2x1
jax: 0.10.0
libtpu: 0.0.40
codegen_flags: <defaults>
</compile_context>

<pallas_src>
import jax
import jax.numpy as jnp
from jax.experimental import pallas as pl
from jax.experimental.pallas import tpu as pltpu


# ----------------------------------------------------------------------------
# Fused kernel: encoder (spatial|temporal matmul + fusion matmul) ->
# decoder (prediction & confidence in ONE matmul) -> 3 refinement blocks.
# All matmuls hit the MXU, activations run on VPU/EUP, everything stays in
# VMEM per row-tile.  All tensors are lane-packed (R logical rows / phys row).
# ----------------------------------------------------------------------------
def _motion_synth_kernel(
    scal_ref,          # SMEM (3,) : refinement scales
    x_ref,             # VMEM (T, R*H)
    wst_ref, bst_ref,  # VMEM (R*H, R*2H), (1, R*2H)   block-diag spatial|temporal
    wf_ref, bf_ref,    # VMEM (R*2H, R*E), (1, R*E)    block-diag cross-modal fusion
    wpc_ref, bpc_ref,  # VMEM (R*E, 2*R*E), (1, 2*R*E) block-diag predictor | conf-bcast
    o_ref,             # VMEM (T, R*E)
):
    x = x_ref[...]

    # --- HierarchicalMotionEncoder -------------------------------------------
    # Spatial + temporal encoders as one block-diagonal (R*H, R*2H) matmul;
    # within each logical row's 2H-lane segment: [:H]=spatial, [H:]=temporal.
    # TODO(synk): PyTorch nn.GELU defaults to exact erf; jax.nn.gelu here uses
    # the tanh approximation (the pure-JAX reference in this script matches it).
    enc = jax.nn.gelu(
        jnp.dot(x, wst_ref[...], preferred_element_type=jnp.float32) + bst_ref[...]
    )  # (T, R*2H)
    fused = jnp.tanh(
        jnp.dot(enc, wf_ref[...], preferred_element_type=jnp.float32) + bf_ref[...]
    )  # (T, R*E) == motion embeddings, lane-packed

    # --- AdaptiveMotionDecoder ------------------------------------------------
    # One matmul yields both the prediction (first R*E columns) and the
    # confidence logit broadcast across each logical row's E lanes (last R*E
    # columns) -- no XLU cross-lane reduce, no extra VPU multiply.
    pc = (
        jnp.dot(fused, wpc_ref[...], preferred_element_type=jnp.float32) + bpc_ref[...]
    )  # (T, 2*R*E)
    re = o_ref.shape[-1]                       # R*E (lane-aligned slice point)
    motion = pc[:, :re] * jax.nn.sigmoid(pc[:, re:])

    # --- MotionRefinementNetwork (3 residual elementwise blocks) -------------
    # TODO(synk): if bundle dumps show the single EUP slot binding, swap these
    # serial tanh passes for a fused VALU rational approximation.
    for k in range(3):
        motion = motion + scal_ref[k] * jnp.tanh(motion)

    # Lane-dense (T, 256) store -> unmasked vst.
    o_ref[...] = motion


def _block_diag(w, r):
    """(a, b) -> (r*a, r*b) block-diagonal replication of w."""
    a, b = w.shape
    eye = jnp.eye(r, dtype=w.dtype)
    return (eye[:, None, :, None] * w[None, :, None, :]).reshape(r * a, r * b)


def advanced_motion_synthesizer(x, params, *, lane_pack=4, row_tile=1024):
    """x: [B, S, H] float32 -> [B, S, E] float32."""
    B, S, H = x.shape
    E = params["Wp"].shape[0]
    R = lane_pack
    N = B * S

    # --- lane-density packing: R logical rows per physical row ----------------
    N_r = ((N + R - 1) // R) * R
    x2 = x.reshape(N, H).astype(jnp.float32)
    if N_r != N:
        # <R rows of pad only when B*S % R != 0 (tiny; usually a no-op).
        x2 = jnp.pad(x2, ((0, N_r - N), (0, 0)))
    Np = N_r // R                         # packed row count
    xp = x2.reshape(Np, R * H)            # pure row-major reshape (no data copy)

    # --- adaptive row tile -----------------------------------------------------
    # Large enough to amortize the ~0.35us/step grid overhead, small enough
    # that grid_n >= 2 so both v7x TensorCores get work; multiple of 8 (f32
    # sublanes).  The ragged last block handles the tail (no wrapper pad).
    assert row_tile % 8 == 0
    half = ((pl.cdiv(Np, 2) + 7) // 8) * 8
    T = max(8, min(row_tile, half))
    grid_n = pl.cdiv(Np, T)

    # --- block-diagonal weight packing ----------------------------------------
    w_st = _block_diag(
        jnp.concatenate([params["Ws"], params["Wt"]], axis=1), R)          # (R*H, R*2H)
    b_st = jnp.tile(
        jnp.concatenate([params["bs"], params["bt"]], axis=1), (1, R))      # (1, R*2H)
    w_f = _block_diag(
        jnp.concatenate([params["Wf1"], params["Wf2"]], axis=0), R)         # (R*2H, R*E)
    b_f = jnp.tile(params["bf"], (1, R))                                    # (1, R*E)

    # Predictor + confidence fused: block-diag Wp, then block-diag broadcast(wc)
    # (every column of the (E,E) block equals wc^T, so the matmul emits the
    # confidence dot product replicated across that logical row's E lanes).
    wc_blk = jnp.broadcast_to(params["wc"].reshape(E, 1), (E, E))
    w_pc = jnp.concatenate(
        [_block_diag(params["Wp"], R), _block_diag(wc_blk, R)], axis=1)     # (R*E, 2*R*E)
    b_pc = jnp.concatenate(
        [jnp.tile(params["bp"], (1, R)),
         jnp.broadcast_to(params["bc"].reshape(1, 1), (1, R * E))], axis=1)  # (1, 2*R*E)

    # Refinement scales -> SMEM via scalar prefetch.
    scalars = params["ref_scales"].reshape(3).astype(jnp.float32)

    full = lambda i, scal: (0, 0)   # weights: same (resident) block every step
    rows = lambda i, scal: (i, 0)   # activations: tile over packed rows

    grid_spec = pltpu.PrefetchScalarGridSpec(
        num_scalar_prefetch=1,
        grid=(grid_n,),
        in_specs=[
            pl.BlockSpec((T, R * H), rows),       # x (lane-packed)
            pl.BlockSpec(w_st.shape, full),       # W_st  block-diag
            pl.BlockSpec(b_st.shape, full),       # b_st
            pl.BlockSpec(w_f.shape, full),        # W_f   block-diag
            pl.BlockSpec(b_f.shape, full),        # b_f
            pl.BlockSpec(w_pc.shape, full),       # W_p | wc-broadcast, block-diag
            pl.BlockSpec(b_pc.shape, full),       # b_p | bc
        ],
        out_specs=pl.BlockSpec((T, R * E), rows),
    )

    RH, R2H, RE = R * H, 2 * R * H, R * E
    flops = 2 * grid_n * T * (RH * R2H + R2H * RE + RE * 2 * RE)
    transcendentals = grid_n * T * (R2H + 5 * RE)
    bytes_accessed = Np * (RH + RE) * 4 + (w_st.size + w_f.size + w_pc.size) * 4

    out = pl.pallas_call(
        _motion_synth_kernel,
        out_shape=jax.ShapeDtypeStruct((Np, R * E), jnp.float32),
        grid_spec=grid_spec,
        compiler_params=pltpu.CompilerParams(
            dimension_semantics=("parallel",),
            # Per-step working set at T=1024 packed rows is <~10 MiB; 32 MiB
            # stays inside v7x's 64 MiB physical VMEM with headroom.
            vmem_limit_bytes=32 * 1024 * 1024,
        ),
        cost_estimate=pl.CostEstimate(
            flops=int(flops),
            transcendentals=int(transcendentals),
            bytes_accessed=int(bytes_accessed),
        ),
    )(
        scalars,
        xp,
        w_st, b_st,
        w_f, b_f,
        w_pc, b_pc,
    )
    # TODO(synk): on v6e/v7x, bf16 matmul operands (f32 accumulation) would add
    # modest MXU/vld headroom; kept f32 for exact parity with the f32 reference.
    out = out.reshape(N_r, E)
    if N_r != N:
        out = out[:N]
    return out.reshape(B, S, E)


# ----------------------------------------------------------------------------
# Deterministic parameter construction (synthetic init, no checkpoint load).
# ----------------------------------------------------------------------------
def make_params(key, hidden_dim, embedding_dim):
    ks = jax.random.split(key, 10)
    H, E = hidden_dim, embedding_dim

    def lin(k, fan_in, shape):
        return (jax.random.normal(k, shape, jnp.float32) / jnp.sqrt(fan_in)).astype(
            jnp.float32
        )

    return {
        "Ws": lin(ks[0], H, (H, H)),
        "bs": jnp.zeros((1, H), jnp.float32),
        "Wt": lin(ks[1], H, (H, H)),
        "bt": jnp.zeros((1, H), jnp.float32),
        "Wf1": lin(ks[2], 2 * H, (H, E)),
        "Wf2": lin(ks[3], 2 * H, (H, E)),
        "bf": jnp.zeros((1, E), jnp.float32),
        "Wp": lin(ks[4], E, (E, E)),
        "bp": jnp.zeros((1, E), jnp.float32),
        "wc": lin(ks[5], E, (1, E)),
        "bc": jnp.zeros((), jnp.float32),
        "ref_scales": jnp.array([0.10, 0.05, 0.025], jnp.float32),
    }


# Plain-JAX reference (unfused, unpacked weights) for correctness checking.
def reference(x, params):
    B, S, H = x.shape
    x2 = x.reshape(B * S, H)
    spatial = jax.nn.gelu(x2 @ params["Ws"] + params["bs"])
    temporal = jax.nn.gelu(x2 @ params["Wt"] + params["bt"])
    fused = jnp.tanh(spatial @ params["Wf1"] + temporal @ params["Wf2"] + params["bf"])
    pred = fused @ params["Wp"] + params["bp"]
    conf = jax.nn.sigmoid(
        jnp.sum(fused * params["wc"], axis=-1, keepdims=True) + params["bc"]
    )
    motion = pred * conf
    for k in range(3):
        motion = motion + params["ref_scales"][k] * jnp.tanh(motion)
    return motion.reshape(B, S, -1)


if __name__ == "__main__":
    B, S = 2, 8                 # batch, sequence length
    hidden_dim = 32             # AdvancedMotionSynthesizer(hidden_dim, ...)
    motion_embedding_dim = 64   # AdvancedMotionSynthesizer(..., motion_embedding_dim)

    key = jax.random.PRNGKey(0)
    kx, kp = jax.random.split(key)
    x = jax.random.normal(kx, (B, S, hidden_dim), jnp.float32)
    params = make_params(kp, hidden_dim, motion_embedding_dim)

    out = advanced_motion_synthesizer(x, params)
    out = jax.block_until_ready(out)

    ref = reference(x, params)
    assert out.shape == (B, S, motion_embedding_dim)
    # Tolerance slightly above f32 ulp to absorb matmul accumulation-order
    # differences introduced by the block-diagonal lane packing.
    assert jnp.allclose(out, ref, atol=1e-4, rtol=1e-4)

    print("KERNEL_OK")
</pallas_src>

<mosaic_0001>
module attributes {stable_mosaic.version = 11 : i64} {
  func.func @_motion_synth_kernel(%arg0: i32, %arg1: memref<3xf32, #tpu.memory_space<smem>>, %arg2: memref<8x128xf32, #tpu.memory_space<vmem>>, %arg3: memref<128x256xf32, #tpu.memory_space<vmem>>, %arg4: memref<1x256xf32, #tpu.memory_space<vmem>>, %arg5: memref<256x256xf32, #tpu.memory_space<vmem>>, %arg6: memref<1x256xf32, #tpu.memory_space<vmem>>, %arg7: memref<256x512xf32, #tpu.memory_space<vmem>>, %arg8: memref<1x512xf32, #tpu.memory_space<vmem>>, %arg9: memref<8x256xf32, #tpu.memory_space<vmem>>) attributes {dimension_semantics = [#tpu.dimension_semantics<parallel>], iteration_bounds = array<i64: 1>, scalar_prefetch = 1 : i64, scratch_operands = 0 : i64, tpu.core_type = #tpu.core_type<tc>, window_params = [{transform_indices = @transform_0, window_bounds = array<i64: 8, 128>}, {pipeline_mode = #tpu.pipeline_mode<synchronous>, transform_indices = @transform_1, window_bounds = array<i64: 128, 256>}, {pipeline_mode = #tpu.pipeline_mode<synchronous>, transform_indices = @transform_2, window_bounds = array<i64: 1, 256>}, {pipeline_mode = #tpu.pipeline_mode<synchronous>, transform_indices = @transform_3, window_bounds = array<i64: 256, 256>}, {pipeline_mode = #tpu.pipeline_mode<synchronous>, transform_indices = @transform_4, window_bounds = array<i64: 1, 256>}, {pipeline_mode = #tpu.pipeline_mode<synchronous>, transform_indices = @transform_5, window_bounds = array<i64: 256, 512>}, {pipeline_mode = #tpu.pipeline_mode<synchronous>, transform_indices = @transform_6, window_bounds = array<i64: 1, 512>}, {transform_indices = @transform_7, window_bounds = array<i64: 8, 256>}]} {
    %c0 = arith.constant 0 : index
    %c0_0 = arith.constant 0 : index
    %0 = vector.load %arg2[%c0, %c0_0] : memref<8x128xf32, #tpu.memory_space<vmem>>, vector<8x128xf32>
    %c0_1 = arith.constant 0 : index
    %c0_2 = arith.constant 0 : index
    %1 = vector.load %arg3[%c0_1, %c0_2] : memref<128x256xf32, #tpu.memory_space<vmem>>, vector<128x256xf32>
    %cst = arith.constant dense<0.000000e+00> : vector<8x256xf32>
    %2 = tpu.matmul %0, %1, %cst {dimension_numbers = #tpu.dot_dimension_numbers<[1], [0], [0], [1], [0, 0, 1, 1], [], []>} : vector<8x128xf32>, vector<128x256xf32>, vector<8x256xf32> -> vector<8x256xf32>
    %c0_3 = arith.constant 0 : index
    %c0_4 = arith.constant 0 : index
    %3 = vector.load %arg4[%c0_3, %c0_4] : memref<1x256xf32, #tpu.memory_space<vmem>>, vector<1x256xf32>
    %4 = vector.broadcast %3 : vector<1x256xf32> to vector<8x256xf32>
    %5 = arith.addf %2, %4 : vector<8x256xf32>
    %6 = arith.mulf %5, %5 : vector<8x256xf32>
    %7 = arith.mulf %5, %6 : vector<8x256xf32>
    %cst_5 = arith.constant 4.471500e-02 : f32
    %8 = vector.broadcast %cst_5 : f32 to vector<8x256xf32>
    %9 = arith.mulf %8, %7 : vector<8x256xf32>
    %10 = arith.addf %5, %9 : vector<8x256xf32>
    %cst_6 = arith.constant 0.797884583 : f32
    %11 = vector.broadcast %cst_6 : f32 to vector<8x256xf32>
    %12 = arith.mulf %11, %10 : vector<8x256xf32>
    %13 = math.tanh %12 : vector<8x256xf32>
    %cst_7 = arith.constant 1.000000e+00 : f32
    %14 = vector.broadcast %cst_7 : f32 to vector<8x256xf32>
    %15 = arith.addf %14, %13 : vector<8x256xf32>
    %cst_8 = arith.constant 5.000000e-01 : f32
    %16 = vector.broadcast %cst_8 : f32 to vector<8x256xf32>
    %17 = arith.mulf %16, %15 : vector<8x256xf32>
    %18 = arith.mulf %5, %17 : vector<8x256xf32>
    %c0_9 = arith.constant 0 : index
    %c0_10 = arith.constant 0 : index
    %19 = vector.load %arg5[%c0_9, %c0_10] : memref<256x256xf32, #tpu.memory_space<vmem>>, vector<256x256xf32>
    %cst_11 = arith.constant dense<0.000000e+00> : vector<8x256xf32>
    %20 = tpu.matmul %18, %19, %cst_11 {dimension_numbers = #tpu.dot_dimension_numbers<[1], [0], [0], [1], [0, 0, 1, 1], [], []>} : vector<8x256xf32>, vector<256x256xf32>, vector<8x256xf32> -> vector<8x256xf32>
    %c0_12 = arith.constant 0 : index
    %c0_13 = arith.constant 0 : index
    %21 = vector.load %arg6[%c0_12, %c0_13] : memref<1x256xf32, #tpu.memory_space<vmem>>, vector<1x256xf32>
    %22 = vector.broadcast %21 : vector<1x256xf32> to vector<8x256xf32>
    %23 = arith.addf %20, %22 : vector<8x256xf32>
    %24 = math.tanh %23 : vector<8x256xf32>
    %c0_14 = arith.constant 0 : index
    %c0_15 = arith.constant 0 : index
    %25 = vector.load %arg7[%c0_14, %c0_15] : memref<256x512xf32, #tpu.memory_space<vmem>>, vector<256x512xf32>
    %cst_16 = arith.constant dense<0.000000e+00> : vector<8x512xf32>
    %26 = tpu.matmul %24, %25, %cst_16 {dimension_numbers = #tpu.dot_dimension_numbers<[1], [0], [0], [1], [0, 0, 1, 1], [], []>} : vector<8x256xf32>, vector<256x512xf32>, vector<8x512xf32> -> vector<8x512xf32>
    %c0_17 = arith.constant 0 : index
    %c0_18 = arith.constant 0 : index
    %27 = vector.load %arg8[%c0_17, %c0_18] : memref<1x512xf32, #tpu.memory_space<vmem>>, vector<1x512xf32>
    %28 = vector.broadcast %27 : vector<1x512xf32> to vector<8x512xf32>
    %29 = arith.addf %26, %28 : vector<8x512xf32>
    %30 = vector.extract_strided_slice %29 {offsets = [0, 0], sizes = [8, 256], strides = [1, 1]} : vector<8x512xf32> to vector<8x256xf32>
    %31 = vector.extract_strided_slice %29 {offsets = [0, 256], sizes = [8, 256], strides = [1, 1]} : vector<8x512xf32> to vector<8x256xf32>
    %32 = arith.negf %31 : vector<8x256xf32>
    %33 = math.exp %32 : vector<8x256xf32>
    %cst_19 = arith.constant 1.000000e+00 : f32
    %34 = vector.broadcast %cst_19 : f32 to vector<8x256xf32>
    %35 = arith.addf %34, %33 : vector<8x256xf32>
    %36 = arith.divf %34, %35 : vector<8x256xf32>
    %37 = arith.mulf %30, %36 : vector<8x256xf32>
    %c0_20 = arith.constant 0 : index
    %38 = memref.load %arg1[%c0_20] : memref<3xf32, #tpu.memory_space<smem>>
    %39 = math.tanh %37 : vector<8x256xf32>
    %40 = vector.broadcast %38 : f32 to vector<8x256xf32>
    %41 = arith.mulf %40, %39 : vector<8x256xf32>
    %42 = arith.addf %37, %41 : vector<8x256xf32>
    %c1 = arith.constant 1 : index
    %43 = memref.load %arg1[%c1] : memref<3xf32, #tpu.memory_space<smem>>
    %44 = math.tanh %42 : vector<8x256xf32>
    %45 = vector.broadcast %43 : f32 to vector<8x256xf32>
    %46 = arith.mulf %45, %44 : vector<8x256xf32>
    %47 = arith.addf %42, %46 : vector<8x256xf32>
    %c2 = arith.constant 2 : index
    %48 = memref.load %arg1[%c2] : memref<3xf32, #tpu.memory_space<smem>>
    %49 = math.tanh %47 : vector<8x256xf32>
    %50 = vector.broadcast %48 : f32 to vector<8x256xf32>
    %51 = arith.mulf %50, %49 : vector<8x256xf32>
    %52 = arith.addf %47, %51 : vector<8x256xf32>
    %c0_21 = arith.constant 0 : index
    %c0_22 = arith.constant 0 : index
    %53 = vector.load %arg9[%c0_21, %c0_22] : memref<8x256xf32, #tpu.memory_space<vmem>>, vector<8x256xf32>
    tpu.vector_store %arg9[%c0_21, %c0_22], %52 {strides = array<i32>} : memref<8x256xf32, #tpu.memory_space<vmem>>, vector<8x256xf32>,
    return
  }
  func.func @transform_0(%arg0: i32, %arg1: memref<3xf32, #tpu.memory_space<smem>>) -> (i32, i32) {
    %c0_i32 = arith.constant 0 : i32
    %c0_i32_0 = arith.constant 0 : i32
    return %arg0, %c0_i32 : i32, i32
  }
  func.func @transform_1(%arg0: i32, %arg1: memref<3xf32, #tpu.memory_space<smem>>) -> (i32, i32) {
    %c0_i32 = arith.constant 0 : i32
    %c0_i32_0 = arith.constant 0 : i32
    %c0_i32_1 = arith.constant 0 : i32
    return %c0_i32, %c0_i32_0 : i32, i32
  }
  func.func @transform_2(%arg0: i32, %arg1: memref<3xf32, #tpu.memory_space<smem>>) -> (i32, i32) {
    %c0_i32 = arith.constant 0 : i32
    %c0_i32_0 = arith.constant 0 : i32
    %c0_i32_1 = arith.constant 0 : i32
    return %c0_i32, %c0_i32_0 : i32, i32
  }
  func.func @transform_3(%arg0: i32, %arg1: memref<3xf32, #tpu.memory_space<smem>>) -> (i32, i32) {
    %c0_i32 = arith.constant 0 : i32
    %c0_i32_0 = arith.constant 0 : i32
    %c0_i32_1 = arith.constant 0 : i32
    return %c0_i32, %c0_i32_0 : i32, i32
  }
  func.func @transform_4(%arg0: i32, %arg1: memref<3xf32, #tpu.memory_space<smem>>) -> (i32, i32) {
    %c0_i32 = arith.constant 0 : i32
    %c0_i32_0 = arith.constant 0 : i32
    %c0_i32_1 = arith.constant 0 : i32
    return %c0_i32, %c0_i32_0 : i32, i32
  }
  func.func @transform_5(%arg0: i32, %arg1: memref<3xf32, #tpu.memory_space<smem>>) -> (i32, i32) {
    %c0_i32 = arith.constant 0 : i32
    %c0_i32_0 = arith.constant 0 : i32
    %c0_i32_1 = arith.constant 0 : i32
    return %c0_i32, %c0_i32_0 : i32, i32
  }
  func.func @transform_6(%arg0: i32, %arg1: memref<3xf32, #tpu.memory_space<smem>>) -> (i32, i32) {
    %c0_i32 = arith.constant 0 : i32
    %c0_i32_0 = arith.constant 0 : i32
    %c0_i32_1 = arith.constant 0 : i32
    return %c0_i32, %c0_i32_0 : i32, i32
  }
  func.func @transform_7(%arg0: i32, %arg1: memref<3xf32, #tpu.memory_space<smem>>) -> (i32, i32) {
    %c0_i32 = arith.constant 0 : i32
    %c0_i32_0 = arith.constant 0 : i32
    return %arg0, %c0_i32 : i32, i32
  }
}

</mosaic_0001>

<llo_original>
// kernel: tpu_custom_call.1
$region0: #{tpu_custom_call.1}
  #allocation0 [shape = 'u32[]', space=smem, size = 0x4, offset = 0x4, fixed_abs, tag = 'smem constant byte address 0x4 - core index']
  #allocation1 [shape = 'u32[144,128]{1,0:T(1,128)}', space=vmem, size = 0x12000, scoped, tag = 'internal scratch']
  #allocation2 [shape = 's32[1]{0}', space=sflag, size = 0x4, scoped, tag = 'scoped memory for tpu_custom_call.1']
  #allocation3 [shape = 'u8[512]{0}', space=smem, size = 0x200, scoped, tag = 'prefetched SMEM operand 0']
  %s0 = inlined_call_operand.hbm [shape: f32[3], index: 0, kind: input, shape index: {}]
  %s1 = inlined_call_operand.hbm [shape: f32[4,128], index: 1, kind: input, shape index: {}]
  %s2 = inlined_call_operand.hbm [shape: f32[128,256], index: 2, kind: input, shape index: {}]
  %s3 = inlined_call_operand.vmem [shape: f32[1,256], index: 3, kind: input, shape index: {}]
  %s4 = inlined_call_operand.hbm [shape: f32[256,256], index: 4, kind: input, shape index: {}]
  %s5 = inlined_call_operand.vmem [shape: f32[1,256], index: 5, kind: input, shape index: {}]
  %s6 = inlined_call_operand.hbm [shape: f32[256,512], index: 6, kind: input, shape index: {}]
  %s7 = inlined_call_operand.vmem [shape: f32[1,512], index: 7, kind: input, shape index: {}]
  %s8 = inlined_call_operand.hbm [shape: f32[4,256], index: 8, kind: output, shape index: {}]
  %s9 = sld [smem:[#allocation0]]
  $region54: #{tpu_custom_call.1} parent=0
    _
  %s11 = ssub.s32 1, %s9
  %s12 = scalar_select 0, %s11, %s9
  %14 = dma.hbm_to_smem %s0, 16, [#allocation3], [#allocation2]
  %15 = dma.done [#allocation2], 16
  %16 = sfence
  $region1: #{tpu_custom_call.1} parent=0
    #allocation4 [shape = 'u8[4096]{0}', space=vmem, size = 0x1000, scoped, tag = 'input window, operand 1, single buffered']
    #allocation5 [shape = 's32[1]{0}', space=sflag, size = 0x4, scoped, tag = 'scoped memory for tpu_custom_call.1']
    #allocation6 [shape = 's32[1]{0}', space=sflag, size = 0x4, scoped, tag = 'scoped memory for tpu_custom_call.1']
    #allocation7 [shape = 'u8[131072]{0}', space=vmem, size = 0x20000, scoped, tag = 'input window, operand 2, single buffered']
    #allocation8 [shape = 's32[1]{0}', space=sflag, size = 0x4, scoped, tag = 'scoped memory for tpu_custom_call.1']
    #allocation9 [shape = 'u8[262144]{0}', space=vmem, size = 0x40000, scoped, tag = 'input window, operand 4, single buffered']
    #allocation10 [shape = 'u8[524288]{0}', space=vmem, size = 0x80000, scoped, tag = 'input window, operand 6, single buffered']
    #allocation11 [shape = 's32[1]{0}', space=sflag, size = 0x4, scoped, tag = 'scoped memory for tpu_custom_call.1']
    #allocation12 [shape = 'u8[8192]{0}', space=vmem, size = 0x2000, scoped, tag = 'output window, operand 0, single buffered']
    %17 = vsyncpa [#allocation5], 0
    %18 = vsyncpa [#allocation8], 0
    %19 = vsyncpa [#allocation11], 0
    %20 = vsyncpa [#allocation6], 0
    // Predicated region
    $region2: #{tpu_custom_call.1} parent=1 // pred_check
      _
    $region3: #{tpu_custom_call.1} parent=1 // pred_check_branch
      %22 = sbr.rel (0) target = $region5
    $region4: #{tpu_custom_call.1} parent=1 // pred_region
      %s24 = ssub.s32 128, 64
      %25 = vsyncadd [#allocation5], %s24
      %s26 = sshll.u32 [#allocation4], 4
      %s27 = int_to_ptr.vmem [resolvable:$true] %s26
      %32 = dma.hbm_to_vmem [thread:$0]  %s1, 64, %s27, [#allocation5], 64, 64, 4
    $region5: #{tpu_custom_call.1} parent=1 // pred_fallthru
      _
    // Predicated region
    $region6: #{tpu_custom_call.1} parent=1 // pred_check
      _
    $region7: #{tpu_custom_call.1} parent=1 // pred_check_branch
      %34 = sbr.rel (0) target = $region9
    $region8: #{tpu_custom_call.1} parent=1 // pred_region
      %s36 = ssub.s32 4096, 4096
      %37 = vsyncadd [#allocation8], %s36
      %s38 = sshll.u32 [#allocation7], 4
      %s39 = int_to_ptr.vmem [resolvable:$true] %s38
      %44 = dma.hbm_to_vmem [thread:$0]  %s2, 4096, %s39, [#allocation8], 256, 256, 16
    $region9: #{tpu_custom_call.1} parent=1 // pred_fallthru
      _
    // Predicated region
    $region10: #{tpu_custom_call.1} parent=1 // pred_check
      _
    $region11: #{tpu_custom_call.1} parent=1 // pred_check_branch
      %46 = sbr.rel (0) target = $region13
    $region12: #{tpu_custom_call.1} parent=1 // pred_region
      _
    $region13: #{tpu_custom_call.1} parent=1 // pred_fallthru
      _
    // Predicated region
    $region14: #{tpu_custom_call.1} parent=1 // pred_check
      _
    $region15: #{tpu_custom_call.1} parent=1 // pred_check_branch
      %48 = sbr.rel (0) target = $region17
    $region16: #{tpu_custom_call.1} parent=1 // pred_region
      %s50 = ssub.s32 8192, 8192
      %51 = vsyncadd [#allocation8], %s50
      %s52 = sshll.u32 [#allocation9], 4
      %s53 = int_to_ptr.vmem [resolvable:$true] %s52
      %58 = dma.hbm_to_vmem [thread:$0]  %s4, 8192, %s53, [#allocation8], 256, 256, 16
    $region17: #{tpu_custom_call.1} parent=1 // pred_fallthru
      _
    // Predicated region
    $region18: #{tpu_custom_call.1} parent=1 // pred_check
      _
    $region19: #{tpu_custom_call.1} parent=1 // pred_check_branch
      %60 = sbr.rel (0) target = $region21
    $region20: #{tpu_custom_call.1} parent=1 // pred_region
      _
    $region21: #{tpu_custom_call.1} parent=1 // pred_fallthru
      _
    // Predicated region
    $region22: #{tpu_custom_call.1} parent=1 // pred_check
      _
    $region23: #{tpu_custom_call.1} parent=1 // pred_check_branch
      %62 = sbr.rel (0) target = $region25
    $region24: #{tpu_custom_call.1} parent=1 // pred_region
      %s64 = ssub.s32 16384, 16384
      %65 = vsyncadd [#allocation11], %s64
      %s66 = sshll.u32 [#allocation10], 4
      %s67 = int_to_ptr.vmem [resolvable:$true] %s66
      %72 = dma.hbm_to_vmem [thread:$0]  %s6, 16384, %s67, [#allocation11], 512, 512, 32
    $region25: #{tpu_custom_call.1} parent=1 // pred_fallthru
      _
    // Predicated region
    $region26: #{tpu_custom_call.1} parent=1 // pred_check
      _
    $region27: #{tpu_custom_call.1} parent=1 // pred_check_branch
      %74 = sbr.rel (0) target = $region29
    $region28: #{tpu_custom_call.1} parent=1 // pred_region
      _
    $region29: #{tpu_custom_call.1} parent=1 // pred_fallthru
      _
    // Predicated region
    $region30: #{tpu_custom_call.1} parent=1 // pred_check
      _
    $region31: #{tpu_custom_call.1} parent=1 // pred_check_branch
      %76 = sbr.rel (0) target = $region33
    $region32: #{tpu_custom_call.1} parent=1 // pred_region
      %77 = dma.done [#allocation5], 128
    $region33: #{tpu_custom_call.1} parent=1 // pred_fallthru
      _
    // Predicated region
    $region34: #{tpu_custom_call.1} parent=1 // pred_check
      _
    $region35: #{tpu_custom_call.1} parent=1 // pred_check_branch
      %79 = sbr.rel (0) target = $region37
    $region36: #{tpu_custom_call.1} parent=1 // pred_region
      %80 = dma.done [#allocation8], 4096
    $region37: #{tpu_custom_call.1} parent=1 // pred_fallthru
      _
    // Predicated region
    $region38: #{tpu_custom_call.1} parent=1 // pred_check
      _
    $region39: #{tpu_custom_call.1} parent=1 // pred_check_branch
      %82 = sbr.rel (0) target = $region41
    $region40: #{tpu_custom_call.1} parent=1 // pred_region
      %83 = dma.done [#allocation8], 8192
    $region41: #{tpu_custom_call.1} parent=1 // pred_fallthru
      _
    // Predicated region
    $region42: #{tpu_custom_call.1} parent=1 // pred_check
      _
    $region43: #{tpu_custom_call.1} parent=1 // pred_check_branch
      %85 = sbr.rel (0) target = $region45
    $region44: #{tpu_custom_call.1} parent=1 // pred_region
      %86 = dma.done [#allocation11], 16384
    $region45: #{tpu_custom_call.1} parent=1 // pred_fallthru
      _
    %v87 = vld [vmem:[#allocation4] sm:$0xff]
    %v88 = vld [vmem:[#allocation7] sm:$0xff]
    %v89 = vld [vmem:[#allocation7 + $0x8] sm:$0xff]
    %v90 = vld [vmem:[#allocation7 + $0x10] sm:$0xff]
    %v91 = vld [vmem:[#allocation7 + $0x18] sm:$0xff]
    %v92 = vld [vmem:[#allocation7 + $0x20] sm:$0xff]
    %v93 = vld [vmem:[#allocation7 + $0x28] sm:$0xff]
    %v94 = vld [vmem:[#allocation7 + $0x30] sm:$0xff]
    %v95 = vld [vmem:[#allocation7 + $0x38] sm:$0xff]
    %v96 = vld [vmem:[#allocation7 + $0x40] sm:$0xff]
    %v97 = vld [vmem:[#allocation7 + $0x48] sm:$0xff]
    %v98 = vld [vmem:[#allocation7 + $0x50] sm:$0xff]
    %v99 = vld [vmem:[#allocation7 + $0x58] sm:$0xff]
    %v100 = vld [vmem:[#allocation7 + $0x60] sm:$0xff]
    %v101 = vld [vmem:[#allocation7 + $0x68] sm:$0xff]
    %v102 = vld [vmem:[#allocation7 + $0x70] sm:$0xff]
    %v103 = vld [vmem:[#allocation7 + $0x78] sm:$0xff]
    %v104 = vld [vmem:[#allocation7 + $0x80] sm:$0xff]
    %v105 = vld [vmem:[#allocation7 + $0x88] sm:$0xff]
    %v106 = vld [vmem:[#allocation7 + $0x90] sm:$0xff]
    %v107 = vld [vmem:[#allocation7 + $0x98] sm:$0xff]
    %v108 = vld [vmem:[#allocation7 + $0xa0] sm:$0xff]
    %v109 = vld [vmem:[#allocation7 + $0xa8] sm:$0xff]
    %v110 = vld [vmem:[#allocation7 + $0xb0] sm:$0xff]
    %v111 = vld [vmem:[#allocation7 + $0xb8] sm:$0xff]
    %v112 = vld [vmem:[#allocation7 + $0xc0] sm:$0xff]
    %v113 = vld [vmem:[#allocation7 + $0xc8] sm:$0xff]
    %v114 = vld [vmem:[#allocation7 + $0xd0] sm:$0xff]
    %v115 = vld [vmem:[#allocation7 + $0xd8] sm:$0xff]
    %v116 = vld [vmem:[#allocation7 + $0xe0] sm:$0xff]
    %v117 = vld [vmem:[#allocation7 + $0xe8] sm:$0xff]
    %v118 = vld [vmem:[#allocation7 + $0xf0] sm:$0xff]
    %v119 = vld [vmem:[#allocation7 + $0xf8] sm:$0xff]
    %v120 = vld [vmem:[%s3] sm:$0x3]
    %v122 = vlaneseq
    %v123 = vshrl.u32 %v122, 7
    %v124 = vsub.s32 0, %v123
    %v125 = vrot.slane %v120, %v124
    %v126 = vlaneseq
    %v127 = vshrl.u32 %v126, 7
    %v128 = vsub.s32 1, %v127
    %v129 = vrot.slane %v120, %v128
    %132 = vmatprep.subr.mxu0 %v89
    %133 = vmatpush1.msra.mxu0 %v88
    %134 = vmatprep.subr.mxu0 %v91
    %135 = vmatpush1.msra.mxu0 %v90
    %136 = vmatprep.subr.mxu0 %v93
    %137 = vmatpush1.msra.mxu0 %v92
    %138 = vmatprep.subr.mxu0 %v95
    %139 = vmatpush1.msra.mxu0 %v94
    %140 = vmatprep.subr.mxu0 %v97
    %141 = vmatpush1.msra.mxu0 %v96
    %142 = vmatprep.subr.mxu0 %v99
    %143 = vmatpush1.msra.mxu0 %v98
    %144 = vmatprep.subr.mxu0 %v101
    %145 = vmatpush1.msra.mxu0 %v100
    %146 = vmatprep.subr.mxu0 %v103
    %147 = vmatpush1.msra.mxu0 %v102
    %148 = vmatprep.subr.mxu0 %v105
    %149 = vmatpush1.msra.mxu0 %v104
    %150 = vmatprep.subr.mxu0 %v107
    %151 = vmatpush1.msra.mxu0 %v106
    %152 = vmatprep.subr.mxu0 %v109
    %153 = vmatpush1.msra.mxu0 %v108
    %154 = vmatprep.subr.mxu0 %v111
    %155 = vmatpush1.msra.mxu0 %v110
    %156 = vmatprep.subr.mxu0 %v113
    %157 = vmatpush1.msra.mxu0 %v112
    %158 = vmatprep.subr.mxu0 %v115
    %159 = vmatpush1.msra.mxu0 %v114
    %160 = vmatprep.subr.mxu0 %v117
    %161 = vmatpush1.msra.mxu0 %v116
    %162 = vmatprep.subr.mxu0 %v119
    %163 = vmatpush1.msra.mxu0 %v118
    %164 = vmatprep.subr.mxu0 0.0
    %165 = vmatpush1.msra.mxu0 0.0
    %166 = vmatprep.subr.mxu0 0.0
    %167 = vmatpush1.msra.mxu0 0.0
    %168 = vmatprep.subr.mxu0 0.0
    %169 = vmatpush1.msra.mxu0 0.0
    %170 = vmatprep.subr.mxu0 0.0
    %171 = vmatpush1.msra.mxu0 0.0
    %172 = vmatprep.subr.mxu0 0.0
    %173 = vmatpush1.msra.mxu0 0.0
    %174 = vmatprep.subr.mxu0 0.0
    %175 = vmatpush1.msra.mxu0 0.0
    %176 = vmatprep.subr.mxu0 0.0
    %177 = vmatpush1.msra.mxu0 0.0
    %178 = vmatprep.subr.mxu0 0.0
    %179 = vmatpush1.msra.mxu0 0.0
    %180 = vmatprep.subr.mxu0 0.0
    %181 = vmatpush1.msra.mxu0 0.0
    %182 = vmatprep.subr.mxu0 0.0
    %183 = vmatpush1.msra.mxu0 0.0
    %184 = vmatprep.subr.mxu0 0.0
    %185 = vmatpush1.msra.mxu0 0.0
    %186 = vmatprep.subr.mxu0 0.0
    %187 = vmatpush1.msra.mxu0 0.0
    %188 = vmatprep.subr.mxu0 0.0
    %189 = vmatpush1.msra.mxu0 0.0
    %190 = vmatprep.subr.mxu0 0.0
    %191 = vmatpush1.msra.mxu0 0.0
    %192 = vmatprep.subr.mxu0 0.0
    %193 = vmatpush1.msra.mxu0 0.0
    %194 = vmatprep.subr.mxu0 0.0
    %195 = vmatpush1.msra.mxu0 0.0
    %196 = vmatprep.mubr.f32.mxu0 0.0
    %197 = vmatmul.mubr.f32.gmra.mrb[0].mxu0 %v87
    %v198 = vpop.f32.mrb[0].mxu0
    %v199 = vadd.f32 %v125, %v198
    %v200 = vpop.f32.mrb[0].mxu0
    %v201 = vadd.f32 %v129, %v200
    %202 = vdwg.mxu0
    %v203 = vmul.f32 %v199, %v199
    %v204 = vmul.f32 %v201, %v201
    %v205 = vmul.f32 %v199, %v203
    %v206 = vmul.f32 %v201, %v204
    %v207 = vmul.f32 %v205, 0.044715
    %v208 = vmul.f32 %v206, 0.044715
    %v209 = vadd.f32 %v199, %v207
    %v210 = vadd.f32 %v201, %v208
    %v211 = vmul.f32 %v209, 0.7978846
    %v212 = vmul.f32 %v210, 0.7978846
    %v213 = vtanh.pop %v211
    %v214 = vtanh.pop %v212
    %v215 = vadd.f32 %v213, 1.0
    %v216 = vadd.f32 %v214, 1.0
    %v217 = vmul.f32 %v215, 0.5
    %v218 = vmul.f32 %v216, 0.5
    %v219 = vmul.f32 %v199, %v217
    %v220 = vmul.f32 %v201, %v218
    %v221 = vld [vmem:[#allocation9] sm:$0xff]
    %v222 = vld [vmem:[#allocation9 + $0x8] sm:$0xff]
    %v223 = vld [vmem:[#allocation9 + $0x10] sm:$0xff]
    %v224 = vld [vmem:[#allocation9 + $0x18] sm:$0xff]
    %v225 = vld [vmem:[#allocation9 + $0x20] sm:$0xff]
    %v226 = vld [vmem:[#allocation9 + $0x28] sm:$0xff]
    %v227 = vld [vmem:[#allocation9 + $0x30] sm:$0xff]
    %v228 = vld [vmem:[#allocation9 + $0x38] sm:$0xff]
    %v229 = vld [vmem:[#allocation9 + $0x40] sm:$0xff]
    %v230 = vld [vmem:[#allocation9 + $0x48] sm:$0xff]
    %v231 = vld [vmem:[#allocation9 + $0x50] sm:$0xff]
    %v232 = vld [vmem:[#allocation9 + $0x58] sm:$0xff]
    %v233 = vld [vmem:[#allocation9 + $0x60] sm:$0xff]
    %v234 = vld [vmem:[#allocation9 + $0x68] sm:$0xff]
    %v235 = vld [vmem:[#allocation9 + $0x70] sm:$0xff]
    %v236 = vld [vmem:[#allocation9 + $0x78] sm:$0xff]
    %v237 = vld [vmem:[#allocation9 + $0x80] sm:$0xff]
    %v238 = vld [vmem:[#allocation9 + $0x88] sm:$0xff]
    %v239 = vld [vmem:[#allocation9 + $0x90] sm:$0xff]
    %v240 = vld [vmem:[#allocation9 + $0x98] sm:$0xff]
    %v241 = vld [vmem:[#allocation9 + $0xa0] sm:$0xff]
    %v242 = vld [vmem:[#allocation9 + $0xa8] sm:$0xff]
    %v243 = vld [vmem:[#allocation9 + $0xb0] sm:$0xff]
    %v244 = vld [vmem:[#allocation9 + $0xb8] sm:$0xff]
    %v245 = vld [vmem:[#allocation9 + $0xc0] sm:$0xff]
    %v246 = vld [vmem:[#allocation9 + $0xc8] sm:$0xff]
    %v247 = vld [vmem:[#allocation9 + $0xd0] sm:$0xff]
    %v248 = vld [vmem:[#allocation9 + $0xd8] sm:$0xff]
    %v249 = vld [vmem:[#allocation9 + $0xe0] sm:$0xff]
    %v250 = vld [vmem:[#allocation9 + $0xe8] sm:$0xff]
    %v251 = vld [vmem:[#allocation9 + $0xf0] sm:$0xff]
    %v252 = vld [vmem:[#allocation9 + $0xf8] sm:$0xff]
    %v253 = vld [vmem:[#allocation9 + $0x100] sm:$0xff]
    %v254 = vld [vmem:[#allocation9 + $0x108] sm:$0xff]
    %v255 = vld [vmem:[#allocation9 + $0x110] sm:$0xff]
    %v256 = vld [vmem:[#allocation9 + $0x118] sm:$0xff]
    %v257 = vld [vmem:[#allocation9 + $0x120] sm:$0xff]
    %v258 = vld [vmem:[#allocation9 + $0x128] sm:$0xff]
    %v259 = vld [vmem:[#allocation9 + $0x130] sm:$0xff]
    %v260 = vld [vmem:[#allocation9 + $0x138] sm:$0xff]
    %v261 = vld [vmem:[#allocation9 + $0x140] sm:$0xff]
    %v262 = vld [vmem:[#allocation9 + $0x148] sm:$0xff]
    %v263 = vld [vmem:[#allocation9 + $0x150] sm:$0xff]
    %v264 = vld [vmem:[#allocation9 + $0x158] sm:$0xff]
    %v265 = vld [vmem:[#allocation9 + $0x160] sm:$0xff]
    %v266 = vld [vmem:[#allocation9 + $0x168] sm:$0xff]
    %v267 = vld [vmem:[#allocation9 + $0x170] sm:$0xff]
    %v268 = vld [vmem:[#allocation9 + $0x178] sm:$0xff]
    %v269 = vld [vmem:[#allocation9 + $0x180] sm:$0xff]
    %v270 = vld [vmem:[#allocation9 + $0x188] sm:$0xff]
    %v271 = vld [vmem:[#allocation9 + $0x190] sm:$0xff]
    %v272 = vld [vmem:[#allocation9 + $0x198] sm:$0xff]
    %v273 = vld [vmem:[#allocation9 + $0x1a0] sm:$0xff]
    %v274 = vld [vmem:[#allocation9 + $0x1a8] sm:$0xff]
    %v275 = vld [vmem:[#allocation9 + $0x1b0] sm:$0xff]
    %v276 = vld [vmem:[#allocation9 + $0x1b8] sm:$0xff]
    %v277 = vld [vmem:[#allocation9 + $0x1c0] sm:$0xff]
    %v278 = vld [vmem:[#allocation9 + $0x1c8] sm:$0xff]
    %v279 = vld [vmem:[#allocation9 + $0x1d0] sm:$0xff]
    %v280 = vld [vmem:[#allocation9 + $0x1d8] sm:$0xff]
    %v281 = vld [vmem:[#allocation9 + $0x1e0] sm:$0xff]
    %v282 = vld [vmem:[#allocation9 + $0x1e8] sm:$0xff]
    %v283 = vld [vmem:[#allocation9 + $0x1f0] sm:$0xff]
    %v284 = vld [vmem:[#allocation9 + $0x1f8] sm:$0xff]
    %v285 = vld [vmem:[%s5] sm:$0x3]
    %v287 = vlaneseq
    %v288 = vshrl.u32 %v287, 7
    %v289 = vsub.s32 0, %v288
    %v290 = vrot.slane %v285, %v289
    %v291 = vlaneseq
    %v292 = vshrl.u32 %v291, 7
    %v293 = vsub.s32 1, %v292
    %v294 = vrot.slane %v285, %v293
    %297 = vmatprep.subr.mxu0 %v222
    %298 = vmatpush1.msra.mxu0 %v221
    %299 = vmatprep.subr.mxu0 %v224
    %300 = vmatpush1.msra.mxu0 %v223
    %301 = vmatprep.subr.mxu0 %v226
    %302 = vmatpush1.msra.mxu0 %v225
    %303 = vmatprep.subr.mxu0 %v228
    %304 = vmatpush1.msra.mxu0 %v227
    %305 = vmatprep.subr.mxu0 %v230
    %306 = vmatpush1.msra.mxu0 %v229
    %307 = vmatprep.subr.mxu0 %v232
    %308 = vmatpush1.msra.mxu0 %v231
    %309 = vmatprep.subr.mxu0 %v234
    %310 = vmatpush1.msra.mxu0 %v233
    %311 = vmatprep.subr.mxu0 %v236
    %312 = vmatpush1.msra.mxu0 %v235
    %313 = vmatprep.subr.mxu0 %v238
    %314 = vmatpush1.msra.mxu0 %v237
    %315 = vmatprep.subr.mxu0 %v240
    %316 = vmatpush1.msra.mxu0 %v239
    %317 = vmatprep.subr.mxu0 %v242
    %318 = vmatpush1.msra.mxu0 %v241
    %319 = vmatprep.subr.mxu0 %v244
    %320 = vmatpush1.msra.mxu0 %v243
    %321 = vmatprep.subr.mxu0 %v246
    %322 = vmatpush1.msra.mxu0 %v245
    %323 = vmatprep.subr.mxu0 %v248
    %324 = vmatpush1.msra.mxu0 %v247
    %325 = vmatprep.subr.mxu0 %v250
    %326 = vmatpush1.msra.mxu0 %v249
    %327 = vmatprep.subr.mxu0 %v252
    %328 = vmatpush1.msra.mxu0 %v251
    %329 = vmatprep.subr.mxu0 %v254
    %330 = vmatpush1.msra.mxu0 %v253
    %331 = vmatprep.subr.mxu0 %v256
    %332 = vmatpush1.msra.mxu0 %v255
    %333 = vmatprep.subr.mxu0 %v258
    %334 = vmatpush1.msra.mxu0 %v257
    %335 = vmatprep.subr.mxu0 %v260
    %336 = vmatpush1.msra.mxu0 %v259
    %337 = vmatprep.subr.mxu0 %v262
    %338 = vmatpush1.msra.mxu0 %v261
    %339 = vmatprep.subr.mxu0 %v264
    %340 = vmatpush1.msra.mxu0 %v263
    %341 = vmatprep.subr.mxu0 %v266
    %342 = vmatpush1.msra.mxu0 %v265
    %343 = vmatprep.subr.mxu0 %v268
    %344 = vmatpush1.msra.mxu0 %v267
    %345 = vmatprep.subr.mxu0 %v270
    %346 = vmatpush1.msra.mxu0 %v269
    %347 = vmatprep.subr.mxu0 %v272
    %348 = vmatpush1.msra.mxu0 %v271
    %349 = vmatprep.subr.mxu0 %v274
    %350 = vmatpush1.msra.mxu0 %v273
    %351 = vmatprep.subr.mxu0 %v276
    %352 = vmatpush1.msra.mxu0 %v275
    %353 = vmatprep.subr.mxu0 %v278
    %354 = vmatpush1.msra.mxu0 %v277
    %355 = vmatprep.subr.mxu0 %v280
    %356 = vmatpush1.msra.mxu0 %v279
    %357 = vmatprep.subr.mxu0 %v282
    %358 = vmatpush1.msra.mxu0 %v281
    %359 = vmatprep.subr.mxu0 %v284
    %360 = vmatpush1.msra.mxu0 %v283
    %361 = vmatprep.mubr.f32.mxu0 %v220
    %362 = vmatmul.mubr.f32.gmra.mrb[0].mxu0 %v219
    %v363 = vpop.f32.mrb[0].mxu0
    %v364 = vadd.f32 %v290, %v363
    %v365 = vpop.f32.mrb[0].mxu0
    %v366 = vadd.f32 %v294, %v365
    %367 = vdwg.mxu0
    %v368 = vtanh.pop %v364
    %v369 = vtanh.pop %v366
    %v370 = vld [vmem:[#allocation10] sm:$0xff]
    %v371 = vld [vmem:[#allocation10 + $0x8] sm:$0xff]
    %v372 = vld [vmem:[#allocation10 + $0x10] sm:$0xff]
    %v373 = vld [vmem:[#allocation10 + $0x18] sm:$0xff]
    %v374 = vld [vmem:[#allocation10 + $0x20] sm:$0xff]
    %v375 = vld [vmem:[#allocation10 + $0x28] sm:$0xff]
    %v376 = vld [vmem:[#allocation10 + $0x30] sm:$0xff]
    %v377 = vld [vmem:[#allocation10 + $0x38] sm:$0xff]
    %v378 = vld [vmem:[#allocation10 + $0x40] sm:$0xff]
    %v379 = vld [vmem:[#allocation10 + $0x48] sm:$0xff]
    %v380 = vld [vmem:[#allocation10 + $0x50] sm:$0xff]
    %v381 = vld [vmem:[#allocation10 + $0x58] sm:$0xff]
    %v382 = vld [vmem:[#allocation10 + $0x60] sm:$0xff]
    %v383 = vld [vmem:[#allocation10 + $0x68] sm:$0xff]
    %v384 = vld [vmem:[#allocation10 + $0x70] sm:$0xff]
    %v385 = vld [vmem:[#allocation10 + $0x78] sm:$0xff]
    %v386 = vld [vmem:[#allocation10 + $0x80] sm:$0xff]
    %v387 = vld [vmem:[#allocation10 + $0x88] sm:$0xff]
    %v388 = vld [vmem:[#allocation10 + $0x90] sm:$0xff]
    %v389 = vld [vmem:[#allocation10 + $0x98] sm:$0xff]
    %v390 = vld [vmem:[#allocation10 + $0xa0] sm:$0xff]
    %v391 = vld [vmem:[#allocation10 + $0xa8] sm:$0xff]
    %v392 = vld [vmem:[#allocation10 + $0xb0] sm:$0xff]
    %v393 = vld [vmem:[#allocation10 + $0xb8] sm:$0xff]
    %v394 = vld [vmem:[#allocation10 + $0xc0] sm:$0xff]
    %v395 = vld [vmem:[#allocation10 + $0xc8] sm:$0xff]
    %v396 = vld [vmem:[#allocation10 + $0xd0] sm:$0xff]
    %v397 = vld [vmem:[#allocation10 + $0xd8] sm:$0xff]
    %v398 = vld [vmem:[#allocation10 + $0xe0] sm:$0xff]
    %v399 = vld [vmem:[#allocation10 + $0xe8] sm:$0xff]
    %v400 = vld [vmem:[#allocation10 + $0xf0] sm:$0xff]
    %v401 = vld [vmem:[#allocation10 + $0xf8] sm:$0xff]
    %v402 = vld [vmem:[#allocation10 + $0x100] sm:$0xff]
    %v403 = vld [vmem:[#allocation10 + $0x108] sm:$0xff]
    %v404 = vld [vmem:[#allocation10 + $0x110] sm:$0xff]
    %v405 = vld [vmem:[#allocation10 + $0x118] sm:$0xff]
    %v406 = vld [vmem:[#allocation10 + $0x120] sm:$0xff]
    %v407 = vld [vmem:[#allocation10 + $0x128] sm:$0xff]
    %v408 = vld [vmem:[#allocation10 + $0x130] sm:$0xff]
    %v409 = vld [vmem:[#allocation10 + $0x138] sm:$0xff]
    %v410 = vld [vmem:[#allocation10 + $0x140] sm:$0xff]
    %v411 = vld [vmem:[#allocation10 + $0x148] sm:$0xff]
    %v412 = vld [vmem:[#allocation10 + $0x150] sm:$0xff]
    %v413 = vld [vmem:[#allocation10 + $0x158] sm:$0xff]
    %v414 = vld [vmem:[#allocation10 + $0x160] sm:$0xff]
    %v415 = vld [vmem:[#allocation10 + $0x168] sm:$0xff]
    %v416 = vld [vmem:[#allocation10 + $0x170] sm:$0xff]
    %v417 = vld [vmem:[#allocation10 + $0x178] sm:$0xff]
    %v418 = vld [vmem:[#allocation10 + $0x180] sm:$0xff]
    %v419 = vld [vmem:[#allocation10 + $0x188] sm:$0xff]
    %v420 = vld [vmem:[#allocation10 + $0x190] sm:$0xff]
    %v421 = vld [vmem:[#allocation10 + $0x198] sm:$0xff]
    %v422 = vld [vmem:[#allocation10 + $0x1a0] sm:$0xff]
    %v423 = vld [vmem:[#allocation10 + $0x1a8] sm:$0xff]
    %v424 = vld [vmem:[#allocation10 + $0x1b0] sm:$0xff]
    %v425 = vld [vmem:[#allocation10 + $0x1b8] sm:$0xff]
    %v426 = vld [vmem:[#allocation10 + $0x1c0] sm:$0xff]
    %v427 = vld [vmem:[#allocation10 + $0x1c8] sm:$0xff]
    %v428 = vld [vmem:[#allocation10 + $0x1d0] sm:$0xff]
    %v429 = vld [vmem:[#allocation10 + $0x1d8] sm:$0xff]
    %v430 = vld [vmem:[#allocation10 + $0x1e0] sm:$0xff]
    %v431 = vld [vmem:[#allocation10 + $0x1e8] sm:$0xff]
    %v432 = vld [vmem:[#allocation10 + $0x1f0] sm:$0xff]
    %v433 = vld [vmem:[#allocation10 + $0x1f8] sm:$0xff]
    %v434 = vld [vmem:[#allocation10 + $0x200] sm:$0xff]
    %v435 = vld [vmem:[#allocation10 + $0x208] sm:$0xff]
    %v436 = vld [vmem:[#allocation10 + $0x210] sm:$0xff]
    %v437 = vld [vmem:[#allocation10 + $0x218] sm:$0xff]
    %v438 = vld [vmem:[#allocation10 + $0x220] sm:$0xff]
    %v439 = vld [vmem:[#allocation10 + $0x228] sm:$0xff]
    %v440 = vld [vmem:[#allocation10 + $0x230] sm:$0xff]
    %v441 = vld [vmem:[#allocation10 + $0x238] sm:$0xff]
    %v442 = vld [vmem:[#allocation10 + $0x240] sm:$0xff]
    %v443 = vld [vmem:[#allocation10 + $0x248] sm:$0xff]
    %v444 = vld [vmem:[#allocation10 + $0x250] sm:$0xff]
    %v445 = vld [vmem:[#allocation10 + $0x258] sm:$0xff]
    %v446 = vld [vmem:[#allocation10 + $0x260] sm:$0xff]
    %v447 = vld [vmem:[#allocation10 + $0x268] sm:$0xff]
    %v448 = vld [vmem:[#allocation10 + $0x270] sm:$0xff]
    %v449 = vld [vmem:[#allocation10 + $0x278] sm:$0xff]
    %v450 = vld [vmem:[#allocation10 + $0x280] sm:$0xff]
    %v451 = vld [vmem:[#allocation10 + $0x288] sm:$0xff]
    %v452 = vld [vmem:[#allocation10 + $0x290] sm:$0xff]
    %v453 = vld [vmem:[#allocation10 + $0x298] sm:$0xff]
    %v454 = vld [vmem:[#allocation10 + $0x2a0] sm:$0xff]
    %v455 = vld [vmem:[#allocation10 + $0x2a8] sm:$0xff]
    %v456 = vld [vmem:[#allocation10 + $0x2b0] sm:$0xff]
    %v457 = vld [vmem:[#allocation10 + $0x2b8] sm:$0xff]
    %v458 = vld [vmem:[#allocation10 + $0x2c0] sm:$0xff]
    %v459 = vld [vmem:[#allocation10 + $0x2c8] sm:$0xff]
    %v460 = vld [vmem:[#allocation10 + $0x2d0] sm:$0xff]
    %v461 = vld [vmem:[#allocation10 + $0x2d8] sm:$0xff]
    %v462 = vld [vmem:[#allocation10 + $0x2e0] sm:$0xff]
    %v463 = vld [vmem:[#allocation10 + $0x2e8] sm:$0xff]
    %v464 = vld [vmem:[#allocation10 + $0x2f0] sm:$0xff]
    %v465 = vld [vmem:[#allocation10 + $0x2f8] sm:$0xff]
    %v466 = vld [vmem:[#allocation10 + $0x300] sm:$0xff]
    %v467 = vld [vmem:[#allocation10 + $0x308] sm:$0xff]
    %v468 = vld [vmem:[#allocation10 + $0x310] sm:$0xff]
    %v469 = vld [vmem:[#allocation10 + $0x318] sm:$0xff]
    %v470 = vld [vmem:[#allocation10 + $0x320] sm:$0xff]
    %v471 = vld [vmem:[#allocation10 + $0x328] sm:$0xff]
    %v472 = vld [vmem:[#allocation10 + $0x330] sm:$0xff]
    %v473 = vld [vmem:[#allocation10 + $0x338] sm:$0xff]
    %v474 = vld [vmem:[#allocation10 + $0x340] sm:$0xff]
    %v475 = vld [vmem:[#allocation10 + $0x348] sm:$0xff]
    %v476 = vld [vmem:[#allocation10 + $0x350] sm:$0xff]
    %v477 = vld [vmem:[#allocation10 + $0x358] sm:$0xff]
    %v478 = vld [vmem:[#allocation10 + $0x360] sm:$0xff]
    %v479 = vld [vmem:[#allocation10 + $0x368] sm:$0xff]
    %v480 = vld [vmem:[#allocation10 + $0x370] sm:$0xff]
    %v481 = vld [vmem:[#allocation10 + $0x378] sm:$0xff]
    %v482 = vld [vmem:[#allocation10 + $0x380] sm:$0xff]
    %v483 = vld [vmem:[#allocation10 + $0x388] sm:$0xff]
    %v484 = vld [vmem:[#allocation10 + $0x390] sm:$0xff]
    %v485 = vld [vmem:[#allocation10 + $0x398] sm:$0xff]
    %v486 = vld [vmem:[#allocation10 + $0x3a0] sm:$0xff]
    %v487 = vld [vmem:[#allocation10 + $0x3a8] sm:$0xff]
    %v488 = vld [vmem:[#allocation10 + $0x3b0] sm:$0xff]
    %v489 = vld [vmem:[#allocation10 + $0x3b8] sm:$0xff]
    %v490 = vld [vmem:[#allocation10 + $0x3c0] sm:$0xff]
    %v491 = vld [vmem:[#allocation10 + $0x3c8] sm:$0xff]
    %v492 = vld [vmem:[#allocation10 + $0x3d0] sm:$0xff]
    %v493 = vld [vmem:[#allocation10 + $0x3d8] sm:$0xff]
    %v494 = vld [vmem:[#allocation10 + $0x3e0] sm:$0xff]
    %v495 = vld [vmem:[#allocation10 + $0x3e8] sm:$0xff]
    %v496 = vld [vmem:[#allocation10 + $0x3f0] sm:$0xff]
    %v497 = vld [vmem:[#allocation10 + $0x3f8] sm:$0xff]
    %v498 = vld [vmem:[%s7] sm:$0xf]
    %v500 = vlaneseq
    %v501 = vshrl.u32 %v500, 7
    %v502 = vsub.s32 0, %v501
    %v503 = vrot.slane %v498, %v502
    %v504 = vlaneseq
    %v505 = vshrl.u32 %v504, 7
    %v506 = vsub.s32 1, %v505
    %v507 = vrot.slane %v498, %v506
    %v508 = vlaneseq
    %v509 = vshrl.u32 %v508, 7
    %v510 = vsub.s32 2, %v509
    %v511 = vrot.slane %v498, %v510
    %v512 = vlaneseq
    %v513 = vshrl.u32 %v512, 7
    %v514 = vsub.s32 3, %v513
    %v515 = vrot.slane %v498, %v514
    %520 = vmatprep.subr.mxu0 %v371
    %521 = vmatpush1.msra.mxu0 %v370
    %522 = vmatprep.subr.mxu0 %v375
    %523 = vmatpush1.msra.mxu0 %v374
    %524 = vmatprep.subr.mxu0 %v379
    %525 = vmatpush1.msra.mxu0 %v378
    %526 = vmatprep.subr.mxu0 %v383
    %527 = vmatpush1.msra.mxu0 %v382
    %528 = vmatprep.subr.mxu0 %v387
    %529 = vmatpush1.msra.mxu0 %v386
    %530 = vmatprep.subr.mxu0 %v391
    %531 = vmatpush1.msra.mxu0 %v390
    %532 = vmatprep.subr.mxu0 %v395
    %533 = vmatpush1.msra.mxu0 %v394
    %534 = vmatprep.subr.mxu0 %v399
    %535 = vmatpush1.msra.mxu0 %v398
    %536 = vmatprep.subr.mxu0 %v403
    %537 = vmatpush1.msra.mxu0 %v402
    %538 = vmatprep.subr.mxu0 %v407
    %539 = vmatpush1.msra.mxu0 %v406
    %540 = vmatprep.subr.mxu0 %v411
    %541 = vmatpush1.msra.mxu0 %v410
    %542 = vmatprep.subr.mxu0 %v415
    %543 = vmatpush1.msra.mxu0 %v414
    %544 = vmatprep.subr.mxu0 %v419
    %545 = vmatpush1.msra.mxu0 %v418
    %546 = vmatprep.subr.mxu0 %v423
    %547 = vmatpush1.msra.mxu0 %v422
    %548 = vmatprep.subr.mxu0 %v427
    %549 = vmatpush1.msra.mxu0 %v426
    %550 = vmatprep.subr.mxu0 %v431
    %551 = vmatpush1.msra.mxu0 %v430
    %552 = vmatprep.subr.mxu0 %v435
    %553 = vmatpush1.msra.mxu0 %v434
    %554 = vmatprep.subr.mxu0 %v439
    %555 = vmatpush1.msra.mxu0 %v438
    %556 = vmatprep.subr.mxu0 %v443
    %557 = vmatpush1.msra.mxu0 %v442
    %558 = vmatprep.subr.mxu0 %v447
    %559 = vmatpush1.msra.mxu0 %v446
    %560 = vmatprep.subr.mxu0 %v451
    %561 = vmatpush1.msra.mxu0 %v450
    %562 = vmatprep.subr.mxu0 %v455
    %563 = vmatpush1.msra.mxu0 %v454
    %564 = vmatprep.subr.mxu0 %v459
    %565 = vmatpush1.msra.mxu0 %v458
    %566 = vmatprep.subr.mxu0 %v463
    %567 = vmatpush1.msra.mxu0 %v462
    %568 = vmatprep.subr.mxu0 %v467
    %569 = vmatpush1.msra.mxu0 %v466
    %570 = vmatprep.subr.mxu0 %v471
    %571 = vmatpush1.msra.mxu0 %v470
    %572 = vmatprep.subr.mxu0 %v475
    %573 = vmatpush1.msra.mxu0 %v474
    %574 = vmatprep.subr.mxu0 %v479
    %575 = vmatpush1.msra.mxu0 %v478
    %576 = vmatprep.subr.mxu0 %v483
    %577 = vmatpush1.msra.mxu0 %v482
    %578 = vmatprep.subr.mxu0 %v487
    %579 = vmatpush1.msra.mxu0 %v486
    %580 = vmatprep.subr.mxu0 %v491
    %581 = vmatpush1.msra.mxu0 %v490
    %582 = vmatprep.subr.mxu0 %v495
    %583 = vmatpush1.msra.mxu0 %v494
    %584 = vmatprep.mubr.f32.mxu0 %v369
    %585 = vmatmul.mubr.f32.gmra.mrb[0].mxu0 %v368
    %v586 = vpop.f32.mrb[0].mxu0
    %v587 = vadd.f32 %v503, %v586
    %v588 = vpop.f32.mrb[0].mxu0
    %v589 = vadd.f32 %v507, %v588
    %590 = vdwg.mxu0
    %591 = vmatprep.subr.mxu0 %v373
    %592 = vmatpush1.msra.mxu0 %v372
    %593 = vmatprep.subr.mxu0 %v377
    %594 = vmatpush1.msra.mxu0 %v376
    %595 = vmatprep.subr.mxu0 %v381
    %596 = vmatpush1.msra.mxu0 %v380
    %597 = vmatprep.subr.mxu0 %v385
    %598 = vmatpush1.msra.mxu0 %v384
    %599 = vmatprep.subr.mxu0 %v389
    %600 = vmatpush1.msra.mxu0 %v388
    %601 = vmatprep.subr.mxu0 %v393
    %602 = vmatpush1.msra.mxu0 %v392
    %603 = vmatprep.subr.mxu0 %v397
    %604 = vmatpush1.msra.mxu0 %v396
    %605 = vmatprep.subr.mxu0 %v401
    %606 = vmatpush1.msra.mxu0 %v400
    %607 = vmatprep.subr.mxu0 %v405
    %608 = vmatpush1.msra.mxu0 %v404
    %609 = vmatprep.subr.mxu0 %v409
    %610 = vmatpush1.msra.mxu0 %v408
    %611 = vmatprep.subr.mxu0 %v413
    %612 = vmatpush1.msra.mxu0 %v412
    %613 = vmatprep.subr.mxu0 %v417
    %614 = vmatpush1.msra.mxu0 %v416
    %615 = vmatprep.subr.mxu0 %v421
    %616 = vmatpush1.msra.mxu0 %v420
    %617 = vmatprep.subr.mxu0 %v425
    %618 = vmatpush1.msra.mxu0 %v424
    %619 = vmatprep.subr.mxu0 %v429
    %620 = vmatpush1.msra.mxu0 %v428
    %621 = vmatprep.subr.mxu0 %v433
    %622 = vmatpush1.msra.mxu0 %v432
    %623 = vmatprep.subr.mxu0 %v437
    %624 = vmatpush1.msra.mxu0 %v436
    %625 = vmatprep.subr.mxu0 %v441
    %626 = vmatpush1.msra.mxu0 %v440
    %627 = vmatprep.subr.mxu0 %v445
    %628 = vmatpush1.msra.mxu0 %v444
    %629 = vmatprep.subr.mxu0 %v449
    %630 = vmatpush1.msra.mxu0 %v448
    %631 = vmatprep.subr.mxu0 %v453
    %632 = vmatpush1.msra.mxu0 %v452
    %633 = vmatprep.subr.mxu0 %v457
    %634 = vmatpush1.msra.mxu0 %v456
    %635 = vmatprep.subr.mxu0 %v461
    %636 = vmatpush1.msra.mxu0 %v460
    %637 = vmatprep.subr.mxu0 %v465
    %638 = vmatpush1.msra.mxu0 %v464
    %639 = vmatprep.subr.mxu0 %v469
    %640 = vmatpush1.msra.mxu0 %v468
    %641 = vmatprep.subr.mxu0 %v473
    %642 = vmatpush1.msra.mxu0 %v472
    %643 = vmatprep.subr.mxu0 %v477
    %644 = vmatpush1.msra.mxu0 %v476
    %645 = vmatprep.subr.mxu0 %v481
    %646 = vmatpush1.msra.mxu0 %v480
    %647 = vmatprep.subr.mxu0 %v485
    %648 = vmatpush1.msra.mxu0 %v484
    %649 = vmatprep.subr.mxu0 %v489
    %650 = vmatpush1.msra.mxu0 %v488
    %651 = vmatprep.subr.mxu0 %v493
    %652 = vmatpush1.msra.mxu0 %v492
    %653 = vmatprep.subr.mxu0 %v497
    %654 = vmatpush1.msra.mxu0 %v496
    %655 = vmatprep.mubr.f32.mxu0 %v369
    %656 = vmatmul.mubr.f32.gmra.mrb[0].mxu0 %v368
    %v657 = vpop.f32.mrb[0].mxu0
    %v658 = vadd.f32 %v511, %v657
    %v659 = vpop.f32.mrb[0].mxu0
    %v660 = vadd.f32 %v515, %v659
    %661 = vdwg.mxu0
    %v662 = vxor.u32 %v658, 2147483648
    %v663 = vxor.u32 %v660, 2147483648
    %v664 = vmul.f32 %v662, 1.442695
    %v665 = vpow.pop %v664
    %v666 = vmul.f32 %v663, 1.442695
    %v667 = vpow.pop %v666
    %v668 = vadd.f32 %v665, 1.0
    %v669 = vadd.f32 %v667, 1.0
    %v670 = vrcp.pop %v668
    %v671 = vmul.f32 1.0, %v670
    %v672 = vrcp.pop %v669
    %v673 = vmul.f32 1.0, %v672
    %v674 = vmul.f32 %v587, %v671
    %v675 = vmul.f32 %v589, %v673
    %s676 = sld [smem:[#allocation3]]
    %v677 = vtanh.pop %v674
    %v678 = vtanh.pop %v675
    %v679 = vstv %s676
    %v680 = vmul.f32 %v679, %v677
    %v681 = vmul.f32 %v679, %v678
    %v682 = vadd.f32 %v674, %v680
    %v683 = vadd.f32 %v675, %v681
    %s684 = sld [smem:[#allocation3 + $0x1]]
    %v685 = vtanh.pop %v682
    %v686 = vtanh.pop %v683
    %v687 = vstv %s684
    %v688 = vmul.f32 %v687, %v685
    %v689 = vmul.f32 %v687, %v686
    %v690 = vadd.f32 %v682, %v688
    %v691 = vadd.f32 %v683, %v689
    %s692 = sld [smem:[#allocation3 + $0x2]]
    %v693 = vtanh.pop %v690
    %v694 = vtanh.pop %v691
    %v695 = vstv %s692
    %v696 = vmul.f32 %v695, %v693
    %v697 = vmul.f32 %v695, %v694
    %v698 = vadd.f32 %v690, %v696
    %v699 = vadd.f32 %v691, %v697
    %v702 = vcombine.low %v698, %v699
    %v703 = vcombine.high %v698, %v699
    %706 = vst [vmem:[#allocation12] sm:$0xff] %v702
    %707 = vst [vmem:[#allocation12 + $0x8] sm:$0xff] %v703
    // Predicated region
    $region46: #{tpu_custom_call.1} parent=1 // pred_check
      _
    $region47: #{tpu_custom_call.1} parent=1 // pred_check_branch
      %709 = sbr.rel (0) target = $region49
    $region48: #{tpu_custom_call.1} parent=1 // pred_region
      %s711 = ssub.s32 256, 128
      %712 = vsyncadd [#allocation6], %s711
      %s713 = sshll.u32 [#allocation12], 4
      %s714 = int_to_ptr.vmem [resolvable:$true] %s713
      %719 = dma.vmem_to_hbm [thread:$0]  %s714, 128, %s8, [#allocation6], 128, 128, 8
    $region49: #{tpu_custom_call.1} parent=1 // pred_fallthru
      _
    // Predicated region
    $region50: #{tpu_custom_call.1} parent=1 // pred_check
      _
    $region51: #{tpu_custom_call.1} parent=1 // pred_check_branch
      %721 = sbr.rel (0) target = $region53
    $region52: #{tpu_custom_call.1} parent=1 // pred_region
      %722 = dma.done [#allocation6], 256
    $region53: #{tpu_custom_call.1} parent=1 // pred_fallthru
      _
    %723 = vsyncpa [#allocation5], 1
    %724 = vsyncpa [#allocation8], 1
    %725 = vsyncpa [#allocation11], 1
    %726 = vsyncpa [#allocation6], 1

</llo_original>
